<compile_context>
chip_gen: v7x
topology: tpu7x:2x2x1
jax: 0.10.0
libtpu: 0.0.40
codegen_flags: <defaults>
</compile_context>

<pallas_src>
import functools

import jax
import jax.numpy as jnp
from jax.experimental import pallas as pl
from jax.experimental.pallas import tpu as pltpu


def _round_up(x, m):
    return (x + m - 1) // m * m


_VMEM_LIMIT_CACHE = None


def _vmem_limit():
    """Per-generation scoped-VMEM budget: ~48 MiB on 64 MiB v7x, up to 96 MiB on v5e/v6e."""
    global _VMEM_LIMIT_CACHE
    if _VMEM_LIMIT_CACHE is None:
        try:
            cap = int(pltpu.get_tpu_info().vmem_capacity_bytes)
        except Exception:
            cap = 64 * 1024 * 1024
        _VMEM_LIMIT_CACHE = max(32 * 1024 * 1024, min(96 * 1024 * 1024, cap * 3 // 4))
    return _VMEM_LIMIT_CACHE


# --------------------------- tiled matmul kernels ----------------------------

def _mm_kernel(a_ref, b_ref, o_ref):
    o_ref[...] = jnp.dot(a_ref[...], b_ref[...],
                         preferred_element_type=jnp.float32).astype(o_ref.dtype)


def _mm_add_kernel(a_ref, b_ref, c_ref, o_ref):
    acc = jnp.dot(a_ref[...], b_ref[...], preferred_element_type=jnp.float32)
    o_ref[...] = (acc + c_ref[...].astype(jnp.float32)).astype(o_ref.dtype)   # fused add


def _pick_mm_tiles(m, k, n):
    if n % 256 == 0:
        tn = 256
    elif n % 128 == 0:
        tn = 128
    else:
        tn = n                                   # full-N block (64-ch layers / head)
    tm = m if m <= 512 else 512
    budget = _vmem_limit() * 3 // 4

    def footprint(tm_):
        # double-buffered bf16 A/B/addend/out tiles + f32 dot result headroom
        return 2 * 2 * (tm_ * k + k * tn + 2 * tm_ * tn) + 4 * tm_ * tn

    while tm > 8 and tm % 8 == 0 and footprint(tm) > budget:
        tm = max(8, (tm // 2) // 8 * 8)
    return tm, tn


def pallas_matmul(a, b, *, addend=None, out_dtype=jnp.bfloat16):
    """a: (M, K) activations (any float dtype).  b: (K, N) bf16 weights (prepared once).
    addend: optional (M, N) residual or (1, N) bias, added inside the f32 accumulator.
    Single K step (no K grid axis / scratch); ragged M handled by pl.cdiv + masked edge
    stores, so there are no wrapper-side pad / slice copies.
    TODO(synk): K-loop fallback for K so large that one step cannot fit VMEM."""
    m, k = a.shape
    kb, n = b.shape
    assert k == kb
    a = a.astype(jnp.bfloat16)
    tm, tn = _pick_mm_tiles(m, k, n)
    grid = (pl.cdiv(m, tm), n // tn)
    a_spec = pl.BlockSpec((tm, k), lambda i, j: (i, 0))
    b_spec = pl.BlockSpec((k, tn), lambda i, j: (0, j))
    o_spec = pl.BlockSpec((tm, tn), lambda i, j: (i, j))
    cp = pltpu.CompilerParams(dimension_semantics=("parallel", "parallel"),
                              vmem_limit_bytes=_vmem_limit())
    out_shape = jax.ShapeDtypeStruct((m, n), out_dtype)
    if addend is None:
        return pl.pallas_call(_mm_kernel, out_shape=out_shape, grid=grid,
                              in_specs=[a_spec, b_spec], out_specs=o_spec,
                              compiler_params=cp)(a, b)
    if addend.shape[0] == 1:                     # broadcast bias row (f32, tiny)
        c_spec = pl.BlockSpec((1, tn), lambda i, j: (0, j))
    else:                                        # full residual, kept bf16
        c_spec = pl.BlockSpec((tm, tn), lambda i, j: (i, j))
    return pl.pallas_call(_mm_add_kernel, out_shape=out_shape, grid=grid,
                          in_specs=[a_spec, b_spec, c_spec], out_specs=o_spec,
                          compiler_params=cp)(a, b, addend)


# ----------------------- direct 3x3 stride-1 conv kernel ----------------------

def _conv3x3_kernel(x_ref, w_ref, o_ref, *, oh, ow, ow_r, cin):
    tn = o_ref.shape[-1]
    acc = jnp.zeros((oh * ow_r, tn), jnp.float32)
    for i in range(3):                           # statically unrolled taps (9 MXU calls)
        for j in range(3):
            a = x_ref[0, i:i + oh, j:j + ow_r, :].reshape(oh * ow_r, cin)
            acc = acc + jnp.dot(a, w_ref[3 * i + j],
                                preferred_element_type=jnp.float32)
    y = acc.reshape(oh, ow_r, tn)[:, :ow, :]     # drop the width round-up columns
    o_ref[0] = y.astype(o_ref.dtype)


def conv3x3_s1(x_nhwc, wp):
    """Direct 3x3 / stride-1 / pad-1 StdConv (no im2col).  Whole padded image per grid
    step; the compute width is rounded up to 16 so the tap reshapes stay layout-free
    (bf16 sublane packing), and the extra zero-padded columns are dropped before store.
    TODO(synk): row-tile the image block for very large feature maps."""
    n, h, w, cin = x_nhwc.shape
    oh, ow = h, w
    ow_r = _round_up(ow, 16)
    wp_r = ow_r + 2
    hp = h + 2
    xp = jnp.pad(x_nhwc.astype(jnp.bfloat16),
                 ((0, 0), (1, 1), (1, wp_r - 1 - w), (0, 0)))
    cout = wp['cout']
    tn = 256 if cout % 256 == 0 else (128 if cout % 128 == 0 else cout)
    kern = functools.partial(_conv3x3_kernel, oh=oh, ow=ow, ow_r=ow_r, cin=cin)
    return pl.pallas_call(
        kern,
        out_shape=jax.ShapeDtypeStruct((n, oh, ow, cout), jnp.bfloat16),
        grid=(n, cout // tn),
        in_specs=[pl.BlockSpec((1, hp, wp_r, cin), lambda b, c: (b, 0, 0, 0)),
                  pl.BlockSpec((9, cin, tn), lambda b, c: (0, 0, c))],
        out_specs=pl.BlockSpec((1, oh, ow, tn), lambda b, c: (b, 0, 0, c)),
        compiler_params=pltpu.CompilerParams(
            dimension_semantics=("parallel", "parallel"),
            vmem_limit_bytes=_vmem_limit()),
    )(xp, wp['taps'])


# ------------------------ weight standardization (prep) ----------------------

def _wstd_kernel(w_ref, o_ref):
    # StdConv2d: per output-channel mean/var over (Cin*KH*KW), unbiased=False, eps=1e-10
    w = w_ref[...]
    mu = jnp.mean(w, axis=1, keepdims=True)
    d = w - mu
    v = jnp.mean(d * d, axis=1, keepdims=True)
    o_ref[...] = d / jnp.sqrt(v + 1e-10)


def pallas_weight_std(w2d):
    cout, k = w2d.shape
    limit = _vmem_limit()
    rt = cout
    for t in (256, 128, 64, 32, 16, 8):
        if cout % t == 0:
            rt = t
            if rt * k * 16 <= limit * 3 // 4:
                break
    return pl.pallas_call(
        _wstd_kernel, out_shape=jax.ShapeDtypeStruct((cout, k), jnp.float32),
        grid=(cout // rt,),
        in_specs=[pl.BlockSpec((rt, k), lambda i: (i, 0))],
        out_specs=pl.BlockSpec((rt, k), lambda i: (i, 0)),
        compiler_params=pltpu.CompilerParams(
            dimension_semantics=("parallel",), vmem_limit_bytes=_vmem_limit()),
    )(w2d.astype(jnp.float32))


# ------------------------------ GroupNorm (+ReLU) -----------------------------

def _gn_kernel(x_ref, g_ref, gt_ref, gamma_ref, beta_ref, o_ref, *, count, apply_relu):
    # GroupNorm(32, C), eps=1e-5, per-sample stats over (H*W, channels-in-group).
    x = x_ref[0].astype(jnp.float32)                               # (HW, C)
    g = g_ref[...]                                                 # (C, NG)
    gt = gt_ref[...]                                               # (NG, C)
    s1 = jnp.sum(x, axis=0, keepdims=True)
    mean_g = jnp.dot(s1, g, preferred_element_type=jnp.float32) / count
    mean_c = jnp.dot(mean_g, gt, preferred_element_type=jnp.float32)
    d = x - mean_c
    s2 = jnp.sum(d * d, axis=0, keepdims=True)
    var_g = jnp.dot(s2, g, preferred_element_type=jnp.float32) / count
    inv_c = jnp.dot(jax.lax.rsqrt(var_g + 1e-5), gt, preferred_element_type=jnp.float32)
    y = d * inv_c * gamma_ref[...] + beta_ref[...]
    if apply_relu:
        y = jnp.maximum(y, 0.0)
    o_ref[0] = y.astype(o_ref.dtype)


def group_norm(x_nhwc, gp, *, relu, out_dtype=jnp.bfloat16, num_groups=32):
    # TODO(synk): tile stats over HW (two-pass) for large images / width factors so the
    # whole-sample block never exceeds v7x's 64 MiB physical VMEM.
    n, h, w, c = x_nhwc.shape
    hw = h * w
    cpg = c // num_groups
    xr = x_nhwc.reshape(n, hw, c)
    kernel = functools.partial(_gn_kernel, count=float(hw * cpg), apply_relu=relu)
    out = pl.pallas_call(
        kernel,
        out_shape=jax.ShapeDtypeStruct((n, hw, c), out_dtype),
        grid=(n,),
        in_specs=[
            pl.BlockSpec((1, hw, c), lambda i: (i, 0, 0)),
            pl.BlockSpec((c, num_groups), lambda i: (0, 0)),
            pl.BlockSpec((num_groups, c), lambda i: (0, 0)),
            pl.BlockSpec((1, c), lambda i: (0, 0)),
            pl.BlockSpec((1, c), lambda i: (0, 0)),
        ],
        out_specs=pl.BlockSpec((1, hw, c), lambda i: (i, 0, 0)),
        compiler_params=pltpu.CompilerParams(
            dimension_semantics=("parallel",), vmem_limit_bytes=_vmem_limit()),
    )(xr, gp['gmat'], gp['gtmat'], gp['gamma'], gp['beta'])
    return out.reshape(n, h, w, c)


# ---------------------------------- pooling -----------------------------------

def _maxpool_kernel(x_ref, o_ref, rm_ref, *, oh, ow):
    wpd = x_ref.shape[2]
    c = x_ref.shape[3]
    # H direction (window 3, stride 2): split rows into (oh, 2) pairs with layout-free
    # reshapes (minor dims untouched) -- no strided loads needed here.
    v0 = x_ref[0, 0:2 * oh, :, :].astype(jnp.float32).reshape(oh, 2, wpd, c)
    v2 = x_ref[0, 2:2 * oh + 2, :, :].astype(jnp.float32).reshape(oh, 2, wpd, c)
    rm_ref[...] = jnp.maximum(jnp.maximum(v0[:, 0], v0[:, 1]), v2[:, 0])
    # W direction (window 3, stride 2): stride-2 sublane loads from the f32 scratch.
    c0 = rm_ref[:, pl.ds(0, ow, stride=2), :]
    c1 = rm_ref[:, pl.ds(1, ow, stride=2), :]
    c2 = rm_ref[:, pl.ds(2, ow, stride=2), :]
    o_ref[0] = jnp.maximum(jnp.maximum(c0, c1), c2).astype(o_ref.dtype)


def max_pool_3x3_s2_pad1(x_nhwc):
    # ConstantPad2d(1, 0) + MaxPool2d(kernel_size=3, stride=2, padding=0), one kernel per
    # image; no (9, M, C) tap staging in HBM.
    n, h, w, c = x_nhwc.shape
    oh = (h - 1) // 2 + 1
    ow = (w - 1) // 2 + 1
    hp = max(h + 2, 2 * oh + 2)                  # extra bottom row only read, never used
    wpd = w + 2
    xp = jnp.pad(x_nhwc, ((0, 0), (1, hp - h - 1), (1, 1), (0, 0)))
    kern = functools.partial(_maxpool_kernel, oh=oh, ow=ow)
    return pl.pallas_call(
        kern,
        out_shape=jax.ShapeDtypeStruct((n, oh, ow, c), x_nhwc.dtype),
        grid=(n,),
        in_specs=[pl.BlockSpec((1, hp, wpd, c), lambda b: (b, 0, 0, 0))],
        out_specs=pl.BlockSpec((1, oh, ow, c), lambda b: (b, 0, 0, 0)),
        scratch_shapes=[pltpu.VMEM((oh, wpd, c), jnp.float32)],
        compiler_params=pltpu.CompilerParams(
            dimension_semantics=("parallel",), vmem_limit_bytes=_vmem_limit()),
    )(xp)


def _avgpool_kernel(x_ref, o_ref):
    o_ref[...] = jnp.mean(x_ref[...].astype(jnp.float32), axis=1, keepdims=True)


def global_avg_pool(x_nhwc):
    n, h, w, c = x_nhwc.shape
    xr = x_nhwc.reshape(n, h * w, c)
    out = pl.pallas_call(
        _avgpool_kernel,
        out_shape=jax.ShapeDtypeStruct((n, 1, c), jnp.float32),
        grid=(n,),
        in_specs=[pl.BlockSpec((1, h * w, c), lambda i: (i, 0, 0))],
        out_specs=pl.BlockSpec((1, 1, c), lambda i: (i, 0, 0)),
        compiler_params=pltpu.CompilerParams(
            dimension_semantics=("parallel",), vmem_limit_bytes=_vmem_limit()),
    )(xr)
    return out.reshape(n, c)


# ------------------------------ conv wrappers ---------------------------------

def _im2col(x_nhwc, kh, kw, stride, pad, pad_value=0.0):
    n, h, w, c = x_nhwc.shape
    if pad > 0:
        x_nhwc = jnp.pad(x_nhwc, ((0, 0), (pad, pad), (pad, pad), (0, 0)),
                         constant_values=pad_value)
    hp, wp = h + 2 * pad, w + 2 * pad
    oh = (hp - kh) // stride + 1
    ow = (wp - kw) // stride + 1
    cols = []
    for i in range(kh):
        for j in range(kw):
            cols.append(x_nhwc[:, i:i + stride * (oh - 1) + 1:stride,
                               j:j + stride * (ow - 1) + 1:stride, :])
    patches = jnp.stack(cols, axis=3).reshape(n * oh * ow, kh * kw * c)
    return patches, oh, ow


def conv2d(x_nhwc, wp, *, stride=1, pad=0, addend=None, out_dtype=jnp.bfloat16):
    kh, kw, cout = wp['kh'], wp['kw'], wp['cout']
    n = x_nhwc.shape[0]
    if kh == 1 and kw == 1:
        if stride > 1:
            # TODO(synk): fold the stride-2 subsampling into the matmul A BlockSpec.
            x_nhwc = x_nhwc[:, ::stride, ::stride, :]
        n, oh, ow, cin = x_nhwc.shape
        patches = x_nhwc.reshape(n * oh * ow, cin)
    elif kh == 3 and kw == 3 and stride == 1 and addend is None:
        return conv3x3_s1(x_nhwc, wp)            # direct tap kernel, no im2col
    else:
        # TODO(synk): direct strided-tap kernel for 7x7 root / stride-2 3x3 convs.
        patches, oh, ow = _im2col(x_nhwc, kh, kw, stride, pad,
                                  pad_value=wp.get('pad_value', 0.0))
    add = addend if addend is not None else wp.get('bias')
    out = pallas_matmul(patches, wp['mat'], addend=add, out_dtype=out_dtype)
    return out.reshape(n, oh, ow, cout)


# --------------------------- parameter preparation ----------------------------

def _prep_conv(w_oihw, *, standardize=True, scale=1.0, fold_bias=False, bias=None):
    """Standardize (once), transpose to tap-major (KH*KW*Cin, Cout), cast to bf16."""
    cout, cin, kh, kw = w_oihw.shape
    k = cin * kh * kw
    w2d = w_oihw.reshape(cout, k).astype(jnp.float32)
    if standardize:
        w2d = pallas_weight_std(w2d)
    badd = None
    if fold_bias:                                    # bias for folded (x-0.5)/0.5
        badd = (-jnp.sum(w2d, axis=1)).reshape(1, cout)
    if bias is not None:
        b = bias.reshape(1, cout).astype(jnp.float32)
        badd = b if badd is None else badd + b
    w2d = w2d * scale
    wmat = jnp.transpose(w2d.reshape(cout, cin, kh, kw), (2, 3, 1, 0)).reshape(k, cout)
    wmat = wmat.astype(jnp.bfloat16)
    out = {'mat': wmat, 'cout': cout, 'cin': cin, 'kh': kh, 'kw': kw, 'bias': badd}
    if kh == 3 and kw == 3:
        out['taps'] = wmat.reshape(9, cin, cout)     # (tap, Cin, Cout) for direct conv
    return out


def _prep_gn(gamma, beta, num_groups=32):
    c = gamma.shape[0]
    cpg = c // num_groups
    gmat = jnp.zeros((c, num_groups), jnp.float32).at[
        jnp.arange(c), jnp.arange(c) // cpg].set(1.0)
    return {'gamma': gamma.reshape(1, c).astype(jnp.float32),
            'beta': beta.reshape(1, c).astype(jnp.float32),
            'gmat': gmat, 'gtmat': gmat.T}


def prepare_params(params):
    # Root conv: fold input normalization (x-0.5)/0.5 = 2x-1 into the weights.
    # pad_value 0.5 keeps the zero-padding of the normalized input exact.
    prep = {'root': _prep_conv(params['root_conv'], scale=2.0, fold_bias=True)}
    prep['root']['pad_value'] = 0.5
    body = []
    for block in params['body']:
        units = []
        for u in block:
            pu = {'stride': u['stride'],
                  'gn1': _prep_gn(u['gn1_gamma'], u['gn1_beta']),
                  'conv1': _prep_conv(u['conv1_w']),
                  'gn2': _prep_gn(u['gn2_gamma'], u['gn2_beta']),
                  'conv2': _prep_conv(u['conv2_w']),
                  'gn3': _prep_gn(u['gn3_gamma'], u['gn3_beta']),
                  'conv3': _prep_conv(u['conv3_w'])}
            if 'down_w' in u:
                pu['down'] = _prep_conv(u['down_w'])
            units.append(pu)
        body.append(units)
    prep['body'] = body
    prep['head_gn'] = _prep_gn(params['head_gn_gamma'], params['head_gn_beta'])
    prep['head'] = _prep_conv(params['head_conv_w'], standardize=False,
                              bias=params['head_conv_b'])
    return prep


# ------------------------------ model definition -------------------------------

def _conv_init(key, cout, cin, kh, kw):
    return 0.05 * jax.random.normal(key, (cout, cin, kh, kw), jnp.float32)


def init_params(key, block_units, wf, head_size):
    keys = iter(jax.random.split(key, 4096))
    nk = lambda: next(keys)
    params = {'root_conv': _conv_init(nk(), 64 * wf, 3, 7, 7)}

    def make_unit(cin, cout, cmid, stride):
        u = {
            'stride': stride,
            'gn1_gamma': 1.0 + 0.01 * jax.random.normal(nk(), (cin,), jnp.float32),
            'gn1_beta': 0.01 * jax.random.normal(nk(), (cin,), jnp.float32),
            'conv1_w': _conv_init(nk(), cmid, cin, 1, 1),
            'gn2_gamma': 1.0 + 0.01 * jax.random.normal(nk(), (cmid,), jnp.float32),
            'gn2_beta': 0.01 * jax.random.normal(nk(), (cmid,), jnp.float32),
            'conv2_w': _conv_init(nk(), cmid, cmid, 3, 3),
            'gn3_gamma': 1.0 + 0.01 * jax.random.normal(nk(), (cmid,), jnp.float32),
            'gn3_beta': 0.01 * jax.random.normal(nk(), (cmid,), jnp.float32),
            'conv3_w': _conv_init(nk(), cout, cmid, 1, 1),
        }
        if stride != 1 or cin != cout:
            u['down_w'] = _conv_init(nk(), cout, cin, 1, 1)
        return u

    block_cfg = [
        (64 * wf, 256 * wf, 64 * wf, 1),
        (256 * wf, 512 * wf, 128 * wf, 2),
        (512 * wf, 1024 * wf, 256 * wf, 2),
        (1024 * wf, 2048 * wf, 512 * wf, 2),
    ]
    body = []
    for bi, (cin, cout, cmid, stride) in enumerate(block_cfg):
        units = [make_unit(cin, cout, cmid, stride)]
        for _ in range(2, block_units[bi] + 1):
            units.append(make_unit(cout, cout, cmid, 1))
        body.append(units)
    params['body'] = body
    params['head_gn_gamma'] = 1.0 + 0.01 * jax.random.normal(nk(), (2048 * wf,), jnp.float32)
    params['head_gn_beta'] = 0.01 * jax.random.normal(nk(), (2048 * wf,), jnp.float32)
    params['head_conv_w'] = _conv_init(nk(), head_size, 2048 * wf, 1, 1)
    params['head_conv_b'] = 0.01 * jax.random.normal(nk(), (head_size,), jnp.float32)
    return params


def bottleneck_forward(x, u):
    # Pre-activation bottleneck: conv3(relu(gn3(conv2(relu(gn2(conv1(relu(gn1(x))))))))) + residual
    stride = u['stride']
    out = group_norm(x, u['gn1'], relu=True)                       # bf16 out feeds MXU
    if 'down' in u:
        residual = conv2d(out, u['down'], stride=stride, pad=0)    # StdConv 1x1 (strided)
    else:
        residual = x
    out = conv2d(out, u['conv1'], stride=1, pad=0)                 # StdConv 1x1
    out = group_norm(out, u['gn2'], relu=True)
    out = conv2d(out, u['conv2'], stride=stride, pad=1)            # StdConv 3x3 (stride here)
    out = group_norm(out, u['gn3'], relu=True)
    n, h, w, _ = out.shape
    cout = u['conv3']['cout']
    res_flat = residual.reshape(n * h * w, cout)                   # bf16 residual stream
    out = conv2d(out, u['conv3'], stride=1, pad=0, addend=res_flat)  # residual fused in epilogue
    return out


def resnetv2_forward(x_nchw, prep):
    x = jnp.transpose(x_nchw, (0, 2, 3, 1)).astype(jnp.float32)    # NCHW -> NHWC
    # (x - 0.5) / 0.5 is folded into the root conv weights/bias (pad value 0.5).
    x = conv2d(x, prep['root'], stride=2, pad=3)                   # StdConv 7x7 / 2 -> bf16
    x = max_pool_3x3_s2_pad1(x)                                    # pad(1,0) + maxpool 3/2
    for block in prep['body']:
        for unit in block:
            x = bottleneck_forward(x, unit)
    x = group_norm(x, prep['head_gn'], relu=True)
    pooled = global_avg_pool(x)                                    # AdaptiveAvgPool2d(1), f32
    logits = pallas_matmul(pooled, prep['head']['mat'],
                           addend=prep['head']['bias'],
                           out_dtype=jnp.float32)                  # 1x1 conv + bias (f32 head)
    return logits                                                  # == torch x[..., 0, 0]


if __name__ == "__main__":
    key = jax.random.PRNGKey(0)
    k_param, k_x = jax.random.split(key)
    block_units = (1, 1, 1, 1)      # small synthetic config
    wf = 1
    img_size = (32, 32)             # 32/32 downsampling -> 1x1 final feature map
    head_size = 16
    batch = 2
    params = init_params(k_param, block_units, wf, head_size)
    prep = prepare_params(params)   # weight-std + transpose + bf16, done once
    x = jax.random.uniform(k_x, (batch, 3, img_size[0], img_size[1]), jnp.float32)

    fwd = jax.jit(lambda inp: resnetv2_forward(inp, prep))
    out = fwd(x)
    out = jax.block_until_ready(out)
    assert out.shape == (batch, head_size)
    assert bool(jnp.all(jnp.isfinite(out)))
    print("KERNEL_OK")
</pallas_src>

<mosaic_0001>
module attributes {stable_mosaic.version = 11 : i64} {
  func.func @_wstd_kernel(%arg0: i32, %arg1: memref<64x147xf32, #tpu.memory_space<vmem>>, %arg2: memref<64x147xf32, #tpu.memory_space<vmem>>) attributes {dimension_semantics = [#tpu.dimension_semantics<parallel>], iteration_bounds = array<i64: 1>, scalar_prefetch = 0 : i64, scratch_operands = 0 : i64, tpu.core_type = #tpu.core_type<tc>, window_params = [{transform_indices = @transform_0, window_bounds = array<i64: 64, 147>}, {transform_indices = @transform_1, window_bounds = array<i64: 64, 147>}]} {
    %c0 = arith.constant 0 : index
    %c0_0 = arith.constant 0 : index
    %0 = vector.load %arg1[%c0, %c0_0] : memref<64x147xf32, #tpu.memory_space<vmem>>, vector<64x147xf32>
    %cst = arith.constant dense<0.000000e+00> : vector<64xf32>
    %1 = vector.multi_reduction <add>, %0, %cst [1] : vector<64x147xf32> to vector<64xf32>
    %2 = vector.shape_cast %1 : vector<64xf32> to vector<64x1xf32>
    %cst_1 = arith.constant 1.470000e+02 : f32
    %3 = vector.broadcast %cst_1 : f32 to vector<64x1xf32>
    %4 = arith.divf %2, %3 : vector<64x1xf32>
    %5 = vector.broadcast %4 : vector<64x1xf32> to vector<64x147xf32>
    %6 = arith.subf %0, %5 : vector<64x147xf32>
    %7 = arith.mulf %6, %6 : vector<64x147xf32>
    %cst_2 = arith.constant dense<0.000000e+00> : vector<64xf32>
    %8 = vector.multi_reduction <add>, %7, %cst_2 [1] : vector<64x147xf32> to vector<64xf32>
    %9 = vector.shape_cast %8 : vector<64xf32> to vector<64x1xf32>
    %cst_3 = arith.constant 1.470000e+02 : f32
    %10 = vector.broadcast %cst_3 : f32 to vector<64x1xf32>
    %11 = arith.divf %9, %10 : vector<64x1xf32>
    %cst_4 = arith.constant 1.000000e-10 : f32
    %12 = vector.broadcast %cst_4 : f32 to vector<64x1xf32>
    %13 = arith.addf %11, %12 : vector<64x1xf32>
    %14 = math.sqrt %13 : vector<64x1xf32>
    %15 = vector.broadcast %14 : vector<64x1xf32> to vector<64x147xf32>
    %16 = arith.divf %6, %15 : vector<64x147xf32>
    %c0_5 = arith.constant 0 : index
    %c0_6 = arith.constant 0 : index
    %17 = vector.load %arg2[%c0_5, %c0_6] : memref<64x147xf32, #tpu.memory_space<vmem>>, vector<64x147xf32>
    tpu.vector_store %arg2[%c0_5, %c0_6], %16 {strides = array<i32>} : memref<64x147xf32, #tpu.memory_space<vmem>>, vector<64x147xf32>,
    return
  }
  func.func @transform_0(%arg0: i32) -> (i32, i32) {
    %c0_i32 = arith.constant 0 : i32
    %c0_i32_0 = arith.constant 0 : i32
    return %arg0, %c0_i32 : i32, i32
  }
  func.func @transform_1(%arg0: i32) -> (i32, i32) {
    %c0_i32 = arith.constant 0 : i32
    %c0_i32_0 = arith.constant 0 : i32
    return %arg0, %c0_i32 : i32, i32
  }
}

</mosaic_0001>

<llo_original>
// kernel: tpu_custom_call.1
$region0: #{tpu_custom_call.1}
  #allocation0 [shape = 'u32[]', space=smem, size = 0x4, offset = 0x4, fixed_abs, tag = 'smem constant byte address 0x4 - core index']
  #allocation1 [shape = 'u32[144,128]{1,0:T(1,128)}', space=vmem, size = 0x12000, scoped, tag = 'internal scratch']
  %s0 = inlined_call_operand.hbm [shape: f32[64,147], index: 0, kind: input, shape index: {}]
  %s1 = inlined_call_operand.hbm [shape: f32[64,147], index: 1, kind: output, shape index: {}]
  %s2 = sld [smem:[#allocation0]]
  $region18: #{tpu_custom_call.1} parent=0
    _
  %s4 = ssub.s32 1, %s2
  %s5 = scalar_select 0, %s4, %s2
  $region1: #{tpu_custom_call.1} parent=0
    #allocation2 [shape = 'u8[65536]{0}', space=vmem, size = 0x10000, scoped, tag = 'input window, operand 0, single buffered']
    #allocation3 [shape = 's32[1]{0}', space=sflag, size = 0x4, scoped, tag = 'scoped memory for tpu_custom_call.1']
    #allocation4 [shape = 's32[1]{0}', space=sflag, size = 0x4, scoped, tag = 'scoped memory for tpu_custom_call.1']
    #allocation5 [shape = 'u8[65536]{0}', space=vmem, size = 0x10000, scoped, tag = 'output window, operand 0, single buffered']
    %6 = vsyncpa [#allocation3], 0
    %7 = vsyncpa [#allocation4], 0
    // Predicated region
    $region2: #{tpu_custom_call.1} parent=1 // pred_check
      _
    $region3: #{tpu_custom_call.1} parent=1 // pred_check_branch
      %9 = sbr.rel (0) target = $region5
    $region4: #{tpu_custom_call.1} parent=1 // pred_region
      %s11 = ssub.s32 2048, 2048
      %12 = vsyncadd [#allocation3], %s11
      %s13 = sshll.u32 [#allocation2], 4
      %s14 = int_to_ptr.vmem [resolvable:$true] %s13
      %19 = dma.hbm_to_vmem [thread:$0]  %s0, 2048, %s14, [#allocation3], 256, 256, 16
    $region5: #{tpu_custom_call.1} parent=1 // pred_fallthru
      _
    // Predicated region
    $region6: #{tpu_custom_call.1} parent=1 // pred_check
      _
    $region7: #{tpu_custom_call.1} parent=1 // pred_check_branch
      %21 = sbr.rel (0) target = $region9
    $region8: #{tpu_custom_call.1} parent=1 // pred_region
      %22 = dma.done [#allocation3], 2048
    $region9: #{tpu_custom_call.1} parent=1 // pred_fallthru
      _
    %v23 = vld [vmem:[#allocation2] sm:$0xff]
    %v24 = vld [vmem:[#allocation2 + $0x8] sm:$0xff]
    %v25 = vld [vmem:[#allocation2 + $0x10] sm:$0xff]
    %v26 = vld [vmem:[#allocation2 + $0x18] sm:$0xff]
    %v27 = vld [vmem:[#allocation2 + $0x20] sm:$0xff]
    %v28 = vld [vmem:[#allocation2 + $0x28] sm:$0xff]
    %v29 = vld [vmem:[#allocation2 + $0x30] sm:$0xff]
    %v30 = vld [vmem:[#allocation2 + $0x38] sm:$0xff]
    %v31 = vld [vmem:[#allocation2 + $0x40] sm:$0xff]
    %v32 = vld [vmem:[#allocation2 + $0x48] sm:$0xff]
    %v33 = vld [vmem:[#allocation2 + $0x50] sm:$0xff]
    %v34 = vld [vmem:[#allocation2 + $0x58] sm:$0xff]
    %v35 = vld [vmem:[#allocation2 + $0x60] sm:$0xff]
    %v36 = vld [vmem:[#allocation2 + $0x68] sm:$0xff]
    %v37 = vld [vmem:[#allocation2 + $0x70] sm:$0xff]
    %v38 = vld [vmem:[#allocation2 + $0x78] sm:$0xff]
    %vm39 = vcmask 154624
    %v40 = vsel %vm39, %v24, 0.0
    %v41 = vadd.f32 %v23, %v40
    %42 = vadd.xlane.f32.xlu0 %v41
    %v43 = vpop.xlane.xlu0 %42
    %v44 = vsel %vm39, %v26, 0.0
    %v45 = vadd.f32 %v25, %v44
    %46 = vadd.xlane.f32.xlu0 %v45
    %v47 = vpop.xlane.xlu0 %46
    %v48 = vsel %vm39, %v28, 0.0
    %v49 = vadd.f32 %v27, %v48
    %50 = vadd.xlane.f32.xlu0 %v49
    %v51 = vpop.xlane.xlu0 %50
    %v52 = vsel %vm39, %v30, 0.0
    %v53 = vadd.f32 %v29, %v52
    %54 = vadd.xlane.f32.xlu0 %v53
    %v55 = vpop.xlane.xlu0 %54
    %v56 = vsel %vm39, %v32, 0.0
    %v57 = vadd.f32 %v31, %v56
    %58 = vadd.xlane.f32.xlu0 %v57
    %v59 = vpop.xlane.xlu0 %58
    %v60 = vsel %vm39, %v34, 0.0
    %v61 = vadd.f32 %v33, %v60
    %62 = vadd.xlane.f32.xlu0 %v61
    %v63 = vpop.xlane.xlu0 %62
    %v64 = vsel %vm39, %v36, 0.0
    %v65 = vadd.f32 %v35, %v64
    %66 = vadd.xlane.f32.xlu0 %v65
    %v67 = vpop.xlane.xlu0 %66
    %v68 = vsel %vm39, %v38, 0.0
    %v69 = vadd.f32 %v37, %v68
    %70 = vadd.xlane.f32.xlu0 %v69
    %v71 = vpop.xlane.xlu0 %70
    %v72 = vrcp.pop 147.0
    %v73 = vmul.f32 %v43, %v72
    %v74 = vmul.f32 %v47, %v72
    %v75 = vmul.f32 %v51, %v72
    %v76 = vmul.f32 %v55, %v72
    %v77 = vmul.f32 %v59, %v72
    %v78 = vmul.f32 %v63, %v72
    %v79 = vmul.f32 %v67, %v72
    %v80 = vmul.f32 %v71, %v72
    %v81 = vsub.f32 %v23, %v73
    %v82 = vsub.f32 %v24, %v73
    %v83 = vsub.f32 %v25, %v74
    %v84 = vsub.f32 %v26, %v74
    %v85 = vsub.f32 %v27, %v75
    %v86 = vsub.f32 %v28, %v75
    %v87 = vsub.f32 %v29, %v76
    %v88 = vsub.f32 %v30, %v76
    %v89 = vsub.f32 %v31, %v77
    %v90 = vsub.f32 %v32, %v77
    %v91 = vsub.f32 %v33, %v78
    %v92 = vsub.f32 %v34, %v78
    %v93 = vsub.f32 %v35, %v79
    %v94 = vsub.f32 %v36, %v79
    %v95 = vsub.f32 %v37, %v80
    %v96 = vsub.f32 %v38, %v80
    %v97 = vmul.f32 %v81, %v81
    %v98 = vmul.f32 %v82, %v82
    %v99 = vmul.f32 %v83, %v83
    %v100 = vmul.f32 %v84, %v84
    %v101 = vmul.f32 %v85, %v85
    %v102 = vmul.f32 %v86, %v86
    %v103 = vmul.f32 %v87, %v87
    %v104 = vmul.f32 %v88, %v88
    %v105 = vmul.f32 %v89, %v89
    %v106 = vmul.f32 %v90, %v90
    %v107 = vmul.f32 %v91, %v91
    %v108 = vmul.f32 %v92, %v92
    %v109 = vmul.f32 %v93, %v93
    %v110 = vmul.f32 %v94, %v94
    %v111 = vmul.f32 %v95, %v95
    %v112 = vmul.f32 %v96, %v96
    %v113 = vsel %vm39, %v98, 0.0
    %v114 = vadd.f32 %v97, %v113
    %115 = vadd.xlane.f32.xlu0 %v114
    %v116 = vpop.xlane.xlu0 %115
    %v117 = vsel %vm39, %v100, 0.0
    %v118 = vadd.f32 %v99, %v117
    %119 = vadd.xlane.f32.xlu0 %v118
    %v120 = vpop.xlane.xlu0 %119
    %v121 = vsel %vm39, %v102, 0.0
    %v122 = vadd.f32 %v101, %v121
    %123 = vadd.xlane.f32.xlu0 %v122
    %v124 = vpop.xlane.xlu0 %123
    %v125 = vsel %vm39, %v104, 0.0
    %v126 = vadd.f32 %v103, %v125
    %127 = vadd.xlane.f32.xlu0 %v126
    %v128 = vpop.xlane.xlu0 %127
    %v129 = vsel %vm39, %v106, 0.0
    %v130 = vadd.f32 %v105, %v129
    %131 = vadd.xlane.f32.xlu0 %v130
    %v132 = vpop.xlane.xlu0 %131
    %v133 = vsel %vm39, %v108, 0.0
    %v134 = vadd.f32 %v107, %v133
    %135 = vadd.xlane.f32.xlu0 %v134
    %v136 = vpop.xlane.xlu0 %135
    %v137 = vsel %vm39, %v110, 0.0
    %v138 = vadd.f32 %v109, %v137
    %139 = vadd.xlane.f32.xlu0 %v138
    %v140 = vpop.xlane.xlu0 %139
    %v141 = vsel %vm39, %v112, 0.0
    %v142 = vadd.f32 %v111, %v141
    %143 = vadd.xlane.f32.xlu0 %v142
    %v144 = vpop.xlane.xlu0 %143
    %v145 = vmul.f32 %v116, %v72
    %v146 = vmul.f32 %v120, %v72
    %v147 = vmul.f32 %v124, %v72
    %v148 = vmul.f32 %v128, %v72
    %v149 = vmul.f32 %v132, %v72
    %v150 = vmul.f32 %v136, %v72
    %v151 = vmul.f32 %v140, %v72
    %v152 = vmul.f32 %v144, %v72
    %v153 = vadd.f32 %v145, 1e-10
    %v154 = vadd.f32 %v146, 1e-10
    %v155 = vadd.f32 %v147, 1e-10
    %v156 = vadd.f32 %v148, 1e-10
    %v157 = vadd.f32 %v149, 1e-10
    %v158 = vadd.f32 %v150, 1e-10
    %v159 = vadd.f32 %v151, 1e-10
    %v160 = vadd.f32 %v152, 1e-10
    %v161 = vrsqrt.pop %v153
    %v162 = vmul.f32 %v153, %v161
    %vm163 = vcmp.eq.f32.partialorder %v153, inf
    %v164 = vsel %vm163, %v153, %v162
    %vm165 = vcmp.eq.f32.partialorder %v153, 0.0
    %v166 = vand.u32 %v153, 2147483648
    %v167 = vsel %vm165, %v166, %v164
    %v168 = vrsqrt.pop %v154
    %v169 = vmul.f32 %v154, %v168
    %vm170 = vcmp.eq.f32.partialorder %v154, inf
    %v171 = vsel %vm170, %v154, %v169
    %vm172 = vcmp.eq.f32.partialorder %v154, 0.0
    %v173 = vand.u32 %v154, 2147483648
    %v174 = vsel %vm172, %v173, %v171
    %v175 = vrsqrt.pop %v155
    %v176 = vmul.f32 %v155, %v175
    %vm177 = vcmp.eq.f32.partialorder %v155, inf
    %v178 = vsel %vm177, %v155, %v176
    %vm179 = vcmp.eq.f32.partialorder %v155, 0.0
    %v180 = vand.u32 %v155, 2147483648
    %v181 = vsel %vm179, %v180, %v178
    %v182 = vrsqrt.pop %v156
    %v183 = vmul.f32 %v156, %v182
    %vm184 = vcmp.eq.f32.partialorder %v156, inf
    %v185 = vsel %vm184, %v156, %v183
    %vm186 = vcmp.eq.f32.partialorder %v156, 0.0
    %v187 = vand.u32 %v156, 2147483648
    %v188 = vsel %vm186, %v187, %v185
    %v189 = vrsqrt.pop %v157
    %v190 = vmul.f32 %v157, %v189
    %vm191 = vcmp.eq.f32.partialorder %v157, inf
    %v192 = vsel %vm191, %v157, %v190
    %vm193 = vcmp.eq.f32.partialorder %v157, 0.0
    %v194 = vand.u32 %v157, 2147483648
    %v195 = vsel %vm193, %v194, %v192
    %v196 = vrsqrt.pop %v158
    %v197 = vmul.f32 %v158, %v196
    %vm198 = vcmp.eq.f32.partialorder %v158, inf
    %v199 = vsel %vm198, %v158, %v197
    %vm200 = vcmp.eq.f32.partialorder %v158, 0.0
    %v201 = vand.u32 %v158, 2147483648
    %v202 = vsel %vm200, %v201, %v199
    %v203 = vrsqrt.pop %v159
    %v204 = vmul.f32 %v159, %v203
    %vm205 = vcmp.eq.f32.partialorder %v159, inf
    %v206 = vsel %vm205, %v159, %v204
    %vm207 = vcmp.eq.f32.partialorder %v159, 0.0
    %v208 = vand.u32 %v159, 2147483648
    %v209 = vsel %vm207, %v208, %v206
    %v210 = vrsqrt.pop %v160
    %v211 = vmul.f32 %v160, %v210
    %vm212 = vcmp.eq.f32.partialorder %v160, inf
    %v213 = vsel %vm212, %v160, %v211
    %vm214 = vcmp.eq.f32.partialorder %v160, 0.0
    %v215 = vand.u32 %v160, 2147483648
    %v216 = vsel %vm214, %v215, %v213
    %v217 = vrcp.pop %v167
    %v218 = vmul.f32 %v81, %v217
    %v219 = vmul.f32 %v82, %v217
    %v220 = vrcp.pop %v174
    %v221 = vmul.f32 %v83, %v220
    %v222 = vmul.f32 %v84, %v220
    %v223 = vrcp.pop %v181
    %v224 = vmul.f32 %v85, %v223
    %v225 = vmul.f32 %v86, %v223
    %v226 = vrcp.pop %v188
    %v227 = vmul.f32 %v87, %v226
    %v228 = vmul.f32 %v88, %v226
    %v229 = vrcp.pop %v195
    %v230 = vmul.f32 %v89, %v229
    %v231 = vmul.f32 %v90, %v229
    %v232 = vrcp.pop %v202
    %v233 = vmul.f32 %v91, %v232
    %v234 = vmul.f32 %v92, %v232
    %v235 = vrcp.pop %v209
    %v236 = vmul.f32 %v93, %v235
    %v237 = vmul.f32 %v94, %v235
    %v238 = vrcp.pop %v216
    %v239 = vmul.f32 %v95, %v238
    %v240 = vmul.f32 %v96, %v238
    %241 = vst [vmem:[#allocation5] sm:$0xff] %v218
    %242 = vst.msk [vmem:[#allocation5 + $0x8] sm:$0xff] %vm39, %v219
    %243 = vst [vmem:[#allocation5 + $0x10] sm:$0xff] %v221
    %244 = vst.msk [vmem:[#allocation5 + $0x18] sm:$0xff] %vm39, %v222
    %245 = vst [vmem:[#allocation5 + $0x20] sm:$0xff] %v224
    %246 = vst.msk [vmem:[#allocation5 + $0x28] sm:$0xff] %vm39, %v225
    %247 = vst [vmem:[#allocation5 + $0x30] sm:$0xff] %v227
    %248 = vst.msk [vmem:[#allocation5 + $0x38] sm:$0xff] %vm39, %v228
    %249 = vst [vmem:[#allocation5 + $0x40] sm:$0xff] %v230
    %250 = vst.msk [vmem:[#allocation5 + $0x48] sm:$0xff] %vm39, %v231
    %251 = vst [vmem:[#allocation5 + $0x50] sm:$0xff] %v233
    %252 = vst.msk [vmem:[#allocation5 + $0x58] sm:$0xff] %vm39, %v234
    %253 = vst [vmem:[#allocation5 + $0x60] sm:$0xff] %v236
    %254 = vst.msk [vmem:[#allocation5 + $0x68] sm:$0xff] %vm39, %v237
    %255 = vst [vmem:[#allocation5 + $0x70] sm:$0xff] %v239
    %256 = vst.msk [vmem:[#allocation5 + $0x78] sm:$0xff] %vm39, %v240
    // Predicated region
    $region10: #{tpu_custom_call.1} parent=1 // pred_check
      _
    $region11: #{tpu_custom_call.1} parent=1 // pred_check_branch
      %258 = sbr.rel (0) target = $region13
    $region12: #{tpu_custom_call.1} parent=1 // pred_region
      %s260 = ssub.s32 2048, 2048
      %261 = vsyncadd [#allocation4], %s260
      %s262 = sshll.u32 [#allocation5], 4
      %s263 = int_to_ptr.vmem [resolvable:$true] %s262
      %268 = dma.vmem_to_hbm [thread:$0]  %s263, 2048, %s1, [#allocation4], 256, 256, 16
    $region13: #{tpu_custom_call.1} parent=1 // pred_fallthru
      _
    // Predicated region
    $region14: #{tpu_custom_call.1} parent=1 // pred_check
      _
    $region15: #{tpu_custom_call.1} parent=1 // pred_check_branch
      %270 = sbr.rel (0) target = $region17
    $region16: #{tpu_custom_call.1} parent=1 // pred_region
      %271 = dma.done [#allocation4], 2048
    $region17: #{tpu_custom_call.1} parent=1 // pred_fallthru
      _
    %272 = vsyncpa [#allocation3], 1
    %273 = vsyncpa [#allocation4], 1

</llo_original>
